<compile_context>
chip_gen: v5e
topology: v5e:2x2
jax: 0.10.0
libtpu: 0.0.40
codegen_flags: <defaults>
</compile_context>

<pallas_src>
import jax
import jax.numpy as jnp
from jax import lax
from jax.experimental import pallas as pl
from jax.experimental.pallas import tpu as pltpu

# ---- problem sizes (small, consistent with the module) ----------------------
N = 2          # batch
H = 16         # height
W = 16         # width
PLANES = 4     # bottleneck planes
EXPANSION = 4
CIN = PLANES * EXPANSION    # inplanes == planes*expansion (downsample=None)
COUT = PLANES * EXPANSION
EPS = 1e-5

ROWS = N * H                # 32  sublane dim of the fused activation slab
XL = W * CIN                # 256 lane dim of input / output slabs
MID = W * PLANES            # 64  lane dim of the bottleneck activations


def _hswish(x):
    # hard_swish(x) = x * relu6(x + 3) / 6
    return x * jnp.clip(x + 3.0, 0.0, 6.0) * (1.0 / 6.0)


def _mm(a, b):
    return jnp.dot(a, b, preferred_element_type=jnp.float32)


def bottleneck_kernel(x_ref, w1_ref, b1_ref, su_ref, sd_ref,
                      w2u_ref, w2m_ref, w2d_ref, b2_ref,
                      w3_ref, b3_ref, o_ref):
    # x_ref  : (ROWS, W*CIN)      rows = (n, h), lanes = (w, ci)
    # w1_ref : (W*CIN, W*PLANES)  block-diag over w, folded conv1+bn1
    # b1_ref : (1, W*PLANES)
    # su_ref : (ROWS, ROWS)       row-shift (h-1) with image-boundary zero rows
    # sd_ref : (ROWS, ROWS)       row-shift (h+1) with image-boundary zero rows
    # w2*_ref: (W*PLANES, W*PLANES) per-ky conv2+bn2 blocks (kx folded in band)
    # b2_ref : (1, W*PLANES)
    # w3_ref : (W*PLANES, W*COUT) block-diag over w, folded conv3+bn3
    # b3_ref : (1, W*COUT)
    # o_ref  : (ROWS, W*COUT)
    x = x_ref[...]                                           # (ROWS, 256)

    # ---- conv1 (1x1) + bn1 + hardswish ----
    o1 = _hswish(_mm(x, w1_ref[...]) + b1_ref[...])          # (ROWS, 64)

    # ---- conv2 (3x3, pad=1, stride=1) + bn2 + hardswish ----
    # ky handled by two 0/1 shift matmuls (boundary zeroing + no cross-image
    # bleed folded into su/sd); kx handled inside the banded weight blocks.
    # Three accumulating K=64 matmuls replace the former lane-axis concat.
    up = _mm(su_ref[...], o1)                                # value at h-1 (ky=0)
    down = _mm(sd_ref[...], o1)                              # value at h+1 (ky=2)
    o2 = _hswish(_mm(up, w2u_ref[...]) + _mm(o1, w2m_ref[...]) +
                 _mm(down, w2d_ref[...]) + b2_ref[...])      # (ROWS, 64)

    # ---- conv3 (1x1) + bn3, residual add (downsample is None), hardswish ----
    o3 = _mm(o2, w3_ref[...]) + b3_ref[...]
    o_ref[...] = _hswish(o3 + x)                             # (ROWS, 256)


def bottleneck_pallas(x2d, w1, b1, s_up, s_down, w2u, w2m, w2d, b2, w3, b3):
    # Single step, whole batch: ~0.25 MiB of VMEM, so no grid / pipelining is
    # needed on any TPU generation (v7x 2-TC split is a measured-only option).
    flops = 2 * ROWS * (XL * MID            # conv1
                        + 2 * ROWS * MID    # two row-shift matmuls
                        + 3 * MID * MID     # three ky matmuls
                        + MID * XL)         # conv3
    bytes_accessed = 4 * (2 * ROWS * XL             # x in, out
                          + XL * MID + MID * XL     # w1, w3
                          + 3 * MID * MID           # w2 blocks
                          + 2 * ROWS * ROWS         # shift matrices
                          + 2 * MID + XL)           # biases
    return pl.pallas_call(
        bottleneck_kernel,
        out_shape=jax.ShapeDtypeStruct((ROWS, W * COUT), jnp.float32),
        in_specs=[pl.BlockSpec(memory_space=pltpu.MemorySpace.VMEM)
                  for _ in range(11)],
        out_specs=pl.BlockSpec(memory_space=pltpu.MemorySpace.VMEM),
        cost_estimate=pl.CostEstimate(flops=flops, transcendentals=0,
                                      bytes_accessed=bytes_accessed),
    )(x2d, w1, b1, s_up, s_down, w2u, w2m, w2d, b2, w3, b3)


# ---- parameter construction (deterministic, synthetic) ----------------------
def make_params(key):
    ks = jax.random.split(key, 16)
    # conv weights in HWIO layout
    w1_hwio = 0.1 * jax.random.normal(ks[0], (1, 1, CIN, PLANES), jnp.float32)
    w2_hwio = 0.1 * jax.random.normal(ks[1], (3, 3, PLANES, PLANES), jnp.float32)
    w3_hwio = 0.1 * jax.random.normal(ks[2], (1, 1, PLANES, COUT), jnp.float32)

    def bn_params(k, c):
        k1, k2, k3, k4 = jax.random.split(k, 4)
        gamma = 1.0 + 0.1 * jax.random.normal(k1, (c,), jnp.float32)
        beta = 0.1 * jax.random.normal(k2, (c,), jnp.float32)
        mean = 0.1 * jax.random.normal(k3, (c,), jnp.float32)
        var = jnp.abs(jax.random.normal(k4, (c,), jnp.float32)) + 0.5
        return gamma, beta, mean, var

    bn1 = bn_params(ks[3], PLANES)
    bn2 = bn_params(ks[4], PLANES)
    bn3 = bn_params(ks[5], COUT)
    return (w1_hwio, w2_hwio, w3_hwio, bn1, bn2, bn3)


def fold_bn(w_hwio, bn):
    gamma, beta, mean, var = bn
    scale = gamma / jnp.sqrt(var + EPS)            # per output channel
    w_folded = w_hwio * scale[None, None, None, :]
    b_folded = beta - mean * scale
    return w_folded, b_folded


def pack_for_kernel(x, w1f, b1, w2f, b2, w3f, b3):
    """Wrapper-side layout plumbing: lane-dense slabs + block-structured weights."""
    # x: (N, H, W, CIN) NHWC -> (N*H, W*CIN); free row-major reshape.
    x2d = x.reshape(ROWS, XL)
    eye_w = jnp.eye(W, dtype=jnp.float32)
    # conv1: (CIN, PLANES) -> block-diagonal over w: (W*CIN, W*PLANES)
    wb1 = jnp.einsum('vw,io->viwo', eye_w, w1f[0, 0]).reshape(XL, MID)
    # conv2: (3,3,PLANES,PLANES) [ky,kx,ci,co]; fold kx offsets into banded
    # per-ky blocks: wb2[ky][v*P+ci, w*P+co] = w2f[ky, v-w+1, ci, co] (|v-w|<=1).
    shift = jnp.stack([jnp.eye(W, k=1 - kx, dtype=jnp.float32)
                       for kx in range(3)])        # (3, W, W), [kx, v, w]
    wb2 = jnp.einsum('xvw,yxio->yviwo', shift, w2f)          # (3, W, P, W, P)
    wb2u = wb2[0].reshape(MID, MID)                # ky=0 block (h-1 tap)
    wb2m = wb2[1].reshape(MID, MID)                # ky=1 block (h   tap)
    wb2d = wb2[2].reshape(MID, MID)                # ky=2 block (h+1 tap)
    # conv3: (PLANES, COUT) -> block-diagonal over w: (W*PLANES, W*COUT)
    wb3 = jnp.einsum('vw,io->viwo', eye_w, w3f[0, 0]).reshape(MID, XL)
    b1t = jnp.tile(b1, W).reshape(1, MID)
    b2t = jnp.tile(b2, W).reshape(1, MID)
    b3t = jnp.tile(b3, W).reshape(1, XL)
    # ky row-shift operators; zero rows at image boundaries so images fused
    # along the batch axis never bleed into each other.
    rr = jnp.arange(ROWS)
    s_up = jnp.where((rr % H != 0)[:, None],
                     jnp.eye(ROWS, k=-1, dtype=jnp.float32), 0.0)
    s_down = jnp.where((rr % H != H - 1)[:, None],
                       jnp.eye(ROWS, k=1, dtype=jnp.float32), 0.0)
    return x2d, wb1, b1t, s_up, s_down, wb2u, wb2m, wb2d, b2t, wb3, b3t


# ---- pure-JAX reference (for correctness check) ------------------------------
def ref_forward(x, params):
    w1_hwio, w2_hwio, w3_hwio, bn1, bn2, bn3 = params
    dn = ('NHWC', 'HWIO', 'NHWC')

    def bn(y, p):
        gamma, beta, mean, var = p
        return (y - mean) / jnp.sqrt(var + EPS) * gamma + beta

    out = lax.conv_general_dilated(x, w1_hwio, (1, 1), 'VALID',
                                   dimension_numbers=dn)
    out = _hswish(bn(out, bn1))
    out = lax.conv_general_dilated(out, w2_hwio, (1, 1), ((1, 1), (1, 1)),
                                   dimension_numbers=dn)
    out = _hswish(bn(out, bn2))
    out = lax.conv_general_dilated(out, w3_hwio, (1, 1), 'VALID',
                                   dimension_numbers=dn)
    out = bn(out, bn3)
    out = out + x                                   # residual (no downsample)
    return _hswish(out)


if __name__ == "__main__":
    key = jax.random.PRNGKey(0)
    k_x, kp = jax.random.split(key)
    x = jax.random.normal(k_x, (N, H, W, CIN), jnp.float32)   # NHWC input

    params = make_params(kp)
    w1_hwio, w2_hwio, w3_hwio, bn1, bn2, bn3 = params

    # Fold BN (inference form) into conv weights/biases, then build the
    # kernel-layout operands.
    w1f, b1 = fold_bn(w1_hwio, bn1)
    w2f, b2 = fold_bn(w2_hwio, bn2)
    w3f, b3 = fold_bn(w3_hwio, bn3)
    packed = pack_for_kernel(x, w1f, b1, w2f, b2, w3f, b3)

    out2d = bottleneck_pallas(*packed)
    out2d = jax.block_until_ready(out2d)
    out = out2d.reshape(N, H, W, COUT)

    ref = ref_forward(x, params)
    assert jnp.allclose(out, ref, rtol=1e-4, atol=1e-4), (
        float(jnp.max(jnp.abs(out - ref))))

    print("KERNEL_OK")
</pallas_src>

<mosaic_0001>
module attributes {stable_mosaic.version = 11 : i64} {
  func.func @bottleneck_kernel(%arg0: memref<32x256xf32, #tpu.memory_space<vmem>>, %arg1: memref<256x64xf32, #tpu.memory_space<vmem>>, %arg2: memref<1x64xf32, #tpu.memory_space<vmem>>, %arg3: memref<32x32xf32, #tpu.memory_space<vmem>>, %arg4: memref<32x32xf32, #tpu.memory_space<vmem>>, %arg5: memref<64x64xf32, #tpu.memory_space<vmem>>, %arg6: memref<64x64xf32, #tpu.memory_space<vmem>>, %arg7: memref<64x64xf32, #tpu.memory_space<vmem>>, %arg8: memref<1x64xf32, #tpu.memory_space<vmem>>, %arg9: memref<64x256xf32, #tpu.memory_space<vmem>>, %arg10: memref<1x256xf32, #tpu.memory_space<vmem>>, %arg11: memref<32x256xf32, #tpu.memory_space<vmem>>) attributes {dimension_semantics = [], scalar_prefetch = 0 : i64, scratch_operands = 0 : i64, tpu.core_type = #tpu.core_type<tc>} {
    %c0 = arith.constant 0 : index
    %c0_0 = arith.constant 0 : index
    %0 = vector.load %arg0[%c0, %c0_0] : memref<32x256xf32, #tpu.memory_space<vmem>>, vector<32x256xf32>
    %c0_1 = arith.constant 0 : index
    %c0_2 = arith.constant 0 : index
    %1 = vector.load %arg1[%c0_1, %c0_2] : memref<256x64xf32, #tpu.memory_space<vmem>>, vector<256x64xf32>
    %cst = arith.constant dense<0.000000e+00> : vector<32x64xf32>
    %2 = tpu.matmul %0, %1, %cst {dimension_numbers = #tpu.dot_dimension_numbers<[1], [0], [0], [1], [0, 0, 1, 1], [], []>} : vector<32x256xf32>, vector<256x64xf32>, vector<32x64xf32> -> vector<32x64xf32>
    %c0_3 = arith.constant 0 : index
    %c0_4 = arith.constant 0 : index
    %3 = vector.load %arg2[%c0_3, %c0_4] : memref<1x64xf32, #tpu.memory_space<vmem>>, vector<1x64xf32>
    %4 = vector.broadcast %3 : vector<1x64xf32> to vector<32x64xf32>
    %5 = arith.addf %2, %4 : vector<32x64xf32>
    %cst_5 = arith.constant 3.000000e+00 : f32
    %6 = vector.broadcast %cst_5 : f32 to vector<32x64xf32>
    %7 = arith.addf %5, %6 : vector<32x64xf32>
    %cst_6 = arith.constant 0.000000e+00 : f32
    %cst_7 = arith.constant 6.000000e+00 : f32
    %8 = vector.broadcast %cst_6 : f32 to vector<32x64xf32>
    %9 = arith.maximumf %8, %7 : vector<32x64xf32>
    %10 = vector.broadcast %cst_7 : f32 to vector<32x64xf32>
    %11 = arith.minimumf %10, %9 : vector<32x64xf32>
    %12 = arith.mulf %5, %11 : vector<32x64xf32>
    %cst_8 = arith.constant 0.166666672 : f32
    %13 = vector.broadcast %cst_8 : f32 to vector<32x64xf32>
    %14 = arith.mulf %12, %13 : vector<32x64xf32>
    %c0_9 = arith.constant 0 : index
    %c0_10 = arith.constant 0 : index
    %15 = vector.load %arg3[%c0_9, %c0_10] : memref<32x32xf32, #tpu.memory_space<vmem>>, vector<32x32xf32>
    %cst_11 = arith.constant dense<0.000000e+00> : vector<32x64xf32>
    %16 = tpu.matmul %15, %14, %cst_11 {dimension_numbers = #tpu.dot_dimension_numbers<[1], [0], [0], [1], [0, 0, 1, 1], [], []>} : vector<32x32xf32>, vector<32x64xf32>, vector<32x64xf32> -> vector<32x64xf32>
    %c0_12 = arith.constant 0 : index
    %c0_13 = arith.constant 0 : index
    %17 = vector.load %arg4[%c0_12, %c0_13] : memref<32x32xf32, #tpu.memory_space<vmem>>, vector<32x32xf32>
    %cst_14 = arith.constant dense<0.000000e+00> : vector<32x64xf32>
    %18 = tpu.matmul %17, %14, %cst_14 {dimension_numbers = #tpu.dot_dimension_numbers<[1], [0], [0], [1], [0, 0, 1, 1], [], []>} : vector<32x32xf32>, vector<32x64xf32>, vector<32x64xf32> -> vector<32x64xf32>
    %c0_15 = arith.constant 0 : index
    %c0_16 = arith.constant 0 : index
    %19 = vector.load %arg5[%c0_15, %c0_16] : memref<64x64xf32, #tpu.memory_space<vmem>>, vector<64x64xf32>
    %cst_17 = arith.constant dense<0.000000e+00> : vector<32x64xf32>
    %20 = tpu.matmul %16, %19, %cst_17 {dimension_numbers = #tpu.dot_dimension_numbers<[1], [0], [0], [1], [0, 0, 1, 1], [], []>} : vector<32x64xf32>, vector<64x64xf32>, vector<32x64xf32> -> vector<32x64xf32>
    %c0_18 = arith.constant 0 : index
    %c0_19 = arith.constant 0 : index
    %21 = vector.load %arg6[%c0_18, %c0_19] : memref<64x64xf32, #tpu.memory_space<vmem>>, vector<64x64xf32>
    %cst_20 = arith.constant dense<0.000000e+00> : vector<32x64xf32>
    %22 = tpu.matmul %14, %21, %cst_20 {dimension_numbers = #tpu.dot_dimension_numbers<[1], [0], [0], [1], [0, 0, 1, 1], [], []>} : vector<32x64xf32>, vector<64x64xf32>, vector<32x64xf32> -> vector<32x64xf32>
    %23 = arith.addf %20, %22 : vector<32x64xf32>
    %c0_21 = arith.constant 0 : index
    %c0_22 = arith.constant 0 : index
    %24 = vector.load %arg7[%c0_21, %c0_22] : memref<64x64xf32, #tpu.memory_space<vmem>>, vector<64x64xf32>
    %cst_23 = arith.constant dense<0.000000e+00> : vector<32x64xf32>
    %25 = tpu.matmul %18, %24, %cst_23 {dimension_numbers = #tpu.dot_dimension_numbers<[1], [0], [0], [1], [0, 0, 1, 1], [], []>} : vector<32x64xf32>, vector<64x64xf32>, vector<32x64xf32> -> vector<32x64xf32>
    %26 = arith.addf %23, %25 : vector<32x64xf32>
    %c0_24 = arith.constant 0 : index
    %c0_25 = arith.constant 0 : index
    %27 = vector.load %arg8[%c0_24, %c0_25] : memref<1x64xf32, #tpu.memory_space<vmem>>, vector<1x64xf32>
    %28 = vector.broadcast %27 : vector<1x64xf32> to vector<32x64xf32>
    %29 = arith.addf %26, %28 : vector<32x64xf32>
    %cst_26 = arith.constant 3.000000e+00 : f32
    %30 = vector.broadcast %cst_26 : f32 to vector<32x64xf32>
    %31 = arith.addf %29, %30 : vector<32x64xf32>
    %cst_27 = arith.constant 0.000000e+00 : f32
    %cst_28 = arith.constant 6.000000e+00 : f32
    %32 = vector.broadcast %cst_27 : f32 to vector<32x64xf32>
    %33 = arith.maximumf %32, %31 : vector<32x64xf32>
    %34 = vector.broadcast %cst_28 : f32 to vector<32x64xf32>
    %35 = arith.minimumf %34, %33 : vector<32x64xf32>
    %36 = arith.mulf %29, %35 : vector<32x64xf32>
    %cst_29 = arith.constant 0.166666672 : f32
    %37 = vector.broadcast %cst_29 : f32 to vector<32x64xf32>
    %38 = arith.mulf %36, %37 : vector<32x64xf32>
    %c0_30 = arith.constant 0 : index
    %c0_31 = arith.constant 0 : index
    %39 = vector.load %arg9[%c0_30, %c0_31] : memref<64x256xf32, #tpu.memory_space<vmem>>, vector<64x256xf32>
    %cst_32 = arith.constant dense<0.000000e+00> : vector<32x256xf32>
    %40 = tpu.matmul %38, %39, %cst_32 {dimension_numbers = #tpu.dot_dimension_numbers<[1], [0], [0], [1], [0, 0, 1, 1], [], []>} : vector<32x64xf32>, vector<64x256xf32>, vector<32x256xf32> -> vector<32x256xf32>
    %c0_33 = arith.constant 0 : index
    %c0_34 = arith.constant 0 : index
    %41 = vector.load %arg10[%c0_33, %c0_34] : memref<1x256xf32, #tpu.memory_space<vmem>>, vector<1x256xf32>
    %42 = vector.broadcast %41 : vector<1x256xf32> to vector<32x256xf32>
    %43 = arith.addf %40, %42 : vector<32x256xf32>
    %44 = arith.addf %43, %0 : vector<32x256xf32>
    %cst_35 = arith.constant 3.000000e+00 : f32
    %45 = vector.broadcast %cst_35 : f32 to vector<32x256xf32>
    %46 = arith.addf %44, %45 : vector<32x256xf32>
    %cst_36 = arith.constant 0.000000e+00 : f32
    %cst_37 = arith.constant 6.000000e+00 : f32
    %47 = vector.broadcast %cst_36 : f32 to vector<32x256xf32>
    %48 = arith.maximumf %47, %46 : vector<32x256xf32>
    %49 = vector.broadcast %cst_37 : f32 to vector<32x256xf32>
    %50 = arith.minimumf %49, %48 : vector<32x256xf32>
    %51 = arith.mulf %44, %50 : vector<32x256xf32>
    %cst_38 = arith.constant 0.166666672 : f32
    %52 = vector.broadcast %cst_38 : f32 to vector<32x256xf32>
    %53 = arith.mulf %51, %52 : vector<32x256xf32>
    %c0_39 = arith.constant 0 : index
    %c0_40 = arith.constant 0 : index
    %54 = vector.load %arg11[%c0_39, %c0_40] : memref<32x256xf32, #tpu.memory_space<vmem>>, vector<32x256xf32>
    tpu.vector_store %arg11[%c0_39, %c0_40], %53 {strides = array<i32>} : memref<32x256xf32, #tpu.memory_space<vmem>>, vector<32x256xf32>,
    return
  }
}

</mosaic_0001>

<llo_original>
// kernel: tpu_custom_call.1
$region0: #{tpu_custom_call.1}
  #allocation0 [shape = 'u32[]', space=smem, size = 0x4, offset = 0x4, fixed_abs, tag = 'smem constant byte address 0x4 - core index']
  #allocation1 [shape = 'u32[72,128]{1,0:T(1,128)}', space=vmem, size = 0x9000, scoped, tag = 'internal scratch']
  %s0 = inlined_call_operand.vmem [shape: f32[32,256], index: 0, kind: input, shape index: {}]
  %s1 = inlined_call_operand.vmem [shape: f32[256,64], index: 1, kind: input, shape index: {}]
  %s2 = inlined_call_operand.hbm [shape: f32[1,64], index: 2, kind: input, shape index: {}]
  %s3 = inlined_call_operand.hbm [shape: f32[32,32], index: 3, kind: input, shape index: {}]
  %s4 = inlined_call_operand.hbm [shape: f32[32,32], index: 4, kind: input, shape index: {}]
  %s5 = inlined_call_operand.vmem [shape: f32[64,64], index: 5, kind: input, shape index: {}]
  %s6 = inlined_call_operand.vmem [shape: f32[64,64], index: 6, kind: input, shape index: {}]
  %s7 = inlined_call_operand.vmem [shape: f32[64,64], index: 7, kind: input, shape index: {}]
  %s8 = inlined_call_operand.vmem [shape: f32[1,64], index: 8, kind: input, shape index: {}]
  %s9 = inlined_call_operand.vmem [shape: f32[64,256], index: 9, kind: input, shape index: {}]
  %s10 = inlined_call_operand.vmem [shape: f32[1,256], index: 10, kind: input, shape index: {}]
  %s11 = inlined_call_operand.hbm [shape: f32[32,256], index: 11, kind: output, shape index: {}]
  %s12 = sld [smem:[#allocation0]]
  $region66: #{tpu_custom_call.1} parent=0
    _
  %s14 = ssub.s32 1, %s12
  %s15 = scalar_select 0, %s14, %s12
  $region1: #{tpu_custom_call.1} parent=0
    #allocation2 [shape = 'u8[512]{0}', space=vmem, size = 0x400, scoped, tag = 'input window, operand 2, single buffered']
    #allocation3 [shape = 's32[1]{0}', space=sflag, size = 0x4, scoped, tag = 'scoped memory for tpu_custom_call.1']
    #allocation4 [shape = 's32[1]{0}', space=sflag, size = 0x4, scoped, tag = 'scoped memory for tpu_custom_call.1']
    #allocation5 [shape = 'u8[16384]{0}', space=vmem, size = 0x4000, scoped, tag = 'input window, operand 3, single buffered']
    #allocation6 [shape = 's32[1]{0}', space=sflag, size = 0x4, scoped, tag = 'scoped memory for tpu_custom_call.1']
    #allocation7 [shape = 'u8[16384]{0}', space=vmem, size = 0x4000, scoped, tag = 'input window, operand 4, single buffered']
    #allocation8 [shape = 'u8[32768]{0}', space=vmem, size = 0x8000, scoped, tag = 'output window, operand 0, single buffered']
    %16 = vsyncpa [#allocation3], 0
    %17 = vsyncpa [#allocation6], 0
    %18 = vsyncpa [#allocation4], 0
    // Predicated region
    $region2: #{tpu_custom_call.1} parent=1 // pred_check
      _
    $region3: #{tpu_custom_call.1} parent=1 // pred_check_branch
      %20 = sbr.rel (0) target = $region5
    $region4: #{tpu_custom_call.1} parent=1 // pred_region
      _
    $region5: #{tpu_custom_call.1} parent=1 // pred_fallthru
      _
    // Predicated region
    $region6: #{tpu_custom_call.1} parent=1 // pred_check
      _
    $region7: #{tpu_custom_call.1} parent=1 // pred_check_branch
      %22 = sbr.rel (0) target = $region9
    $region8: #{tpu_custom_call.1} parent=1 // pred_region
      _
    $region9: #{tpu_custom_call.1} parent=1 // pred_fallthru
      _
    // Predicated region
    $region10: #{tpu_custom_call.1} parent=1 // pred_check
      _
    $region11: #{tpu_custom_call.1} parent=1 // pred_check_branch
      %24 = sbr.rel (0) target = $region13
    $region12: #{tpu_custom_call.1} parent=1 // pred_region
      %26 = vsyncadd [#allocation3], 0
      %s28 = sshll.u32 %s2, 4
      %s29 = int_to_ptr.hbm [resolvable:$true] %s28
      %s30 = sshll.u32 [#allocation2], 4
      %s31 = int_to_ptr.vmem [resolvable:$true] %s30
      %33 = dma.hbm_to_vmem [thread:$0]  %s29, 16, %s31, [#allocation3]
    $region13: #{tpu_custom_call.1} parent=1 // pred_fallthru
      _
    // Predicated region
    $region14: #{tpu_custom_call.1} parent=1 // pred_check
      _
    $region15: #{tpu_custom_call.1} parent=1 // pred_check_branch
      %35 = sbr.rel (0) target = $region17
    $region16: #{tpu_custom_call.1} parent=1 // pred_region
      %37 = vsyncadd [#allocation6], 0
      %s38 = sshll.u32 %s3, 4
      %s39 = int_to_ptr.hbm [resolvable:$true] %s38
      %s40 = sshll.u32 [#allocation5], 4
      %s41 = int_to_ptr.vmem [resolvable:$true] %s40
      %46 = dma.hbm_to_vmem [thread:$0]  %s39, 512, %s41, [#allocation6], 128, 128, 8
    $region17: #{tpu_custom_call.1} parent=1 // pred_fallthru
      _
    // Predicated region
    $region18: #{tpu_custom_call.1} parent=1 // pred_check
      _
    $region19: #{tpu_custom_call.1} parent=1 // pred_check_branch
      %48 = sbr.rel (0) target = $region21
    $region20: #{tpu_custom_call.1} parent=1 // pred_region
      %50 = vsyncadd [#allocation6], 0
      %s51 = sshll.u32 %s4, 4
      %s52 = int_to_ptr.hbm [resolvable:$true] %s51
      %s53 = sshll.u32 [#allocation7], 4
      %s54 = int_to_ptr.vmem [resolvable:$true] %s53
      %59 = dma.hbm_to_vmem [thread:$0]  %s52, 512, %s54, [#allocation6], 128, 128, 8
    $region21: #{tpu_custom_call.1} parent=1 // pred_fallthru
      _
    // Predicated region
    $region22: #{tpu_custom_call.1} parent=1 // pred_check
      _
    $region23: #{tpu_custom_call.1} parent=1 // pred_check_branch
      %61 = sbr.rel (0) target = $region25
    $region24: #{tpu_custom_call.1} parent=1 // pred_region
      _
    $region25: #{tpu_custom_call.1} parent=1 // pred_fallthru
      _
    // Predicated region
    $region26: #{tpu_custom_call.1} parent=1 // pred_check
      _
    $region27: #{tpu_custom_call.1} parent=1 // pred_check_branch
      %63 = sbr.rel (0) target = $region29
    $region28: #{tpu_custom_call.1} parent=1 // pred_region
      _
    $region29: #{tpu_custom_call.1} parent=1 // pred_fallthru
      _
    // Predicated region
    $region30: #{tpu_custom_call.1} parent=1 // pred_check
      _
    $region31: #{tpu_custom_call.1} parent=1 // pred_check_branch
      %65 = sbr.rel (0) target = $region33
    $region32: #{tpu_custom_call.1} parent=1 // pred_region
      _
    $region33: #{tpu_custom_call.1} parent=1 // pred_fallthru
      _
    // Predicated region
    $region34: #{tpu_custom_call.1} parent=1 // pred_check
      _
    $region35: #{tpu_custom_call.1} parent=1 // pred_check_branch
      %67 = sbr.rel (0) target = $region37
    $region36: #{tpu_custom_call.1} parent=1 // pred_region
      _
    $region37: #{tpu_custom_call.1} parent=1 // pred_fallthru
      _
    // Predicated region
    $region38: #{tpu_custom_call.1} parent=1 // pred_check
      _
    $region39: #{tpu_custom_call.1} parent=1 // pred_check_branch
      %69 = sbr.rel (0) target = $region41
    $region40: #{tpu_custom_call.1} parent=1 // pred_region
      _
    $region41: #{tpu_custom_call.1} parent=1 // pred_fallthru
      _
    // Predicated region
    $region42: #{tpu_custom_call.1} parent=1 // pred_check
      _
    $region43: #{tpu_custom_call.1} parent=1 // pred_check_branch
      %71 = sbr.rel (0) target = $region45
    $region44: #{tpu_custom_call.1} parent=1 // pred_region
      _
    $region45: #{tpu_custom_call.1} parent=1 // pred_fallthru
      _
    // Predicated region
    $region46: #{tpu_custom_call.1} parent=1 // pred_check
      _
    $region47: #{tpu_custom_call.1} parent=1 // pred_check_branch
      %73 = sbr.rel (0) target = $region49
    $region48: #{tpu_custom_call.1} parent=1 // pred_region
      %75 = dma.done [#allocation3], 16
    $region49: #{tpu_custom_call.1} parent=1 // pred_fallthru
      _
    // Predicated region
    $region50: #{tpu_custom_call.1} parent=1 // pred_check
      _
    $region51: #{tpu_custom_call.1} parent=1 // pred_check_branch
      %77 = sbr.rel (0) target = $region53
    $region52: #{tpu_custom_call.1} parent=1 // pred_region
      %79 = dma.done [#allocation6], 512
    $region53: #{tpu_custom_call.1} parent=1 // pred_fallthru
      _
    // Predicated region
    $region54: #{tpu_custom_call.1} parent=1 // pred_check
      _
    $region55: #{tpu_custom_call.1} parent=1 // pred_check_branch
      %81 = sbr.rel (0) target = $region57
    $region56: #{tpu_custom_call.1} parent=1 // pred_region
      %83 = dma.done [#allocation6], 512
    $region57: #{tpu_custom_call.1} parent=1 // pred_fallthru
      _
    %v84 = vld [vmem:[%s0] sm:$0xff]
    %v85 = vld [vmem:[%s0 + $0x8] sm:$0xff]
    %v86 = vld [vmem:[%s0 + $0x10] sm:$0xff]
    %v87 = vld [vmem:[%s0 + $0x18] sm:$0xff]
    %v88 = vld [vmem:[%s0 + $0x20] sm:$0xff]
    %v89 = vld [vmem:[%s0 + $0x28] sm:$0xff]
    %v90 = vld [vmem:[%s0 + $0x30] sm:$0xff]
    %v91 = vld [vmem:[%s0 + $0x38] sm:$0xff]
    %v92 = vld [vmem:[%s1] sm:$0xff]
    %v93 = vld [vmem:[%s1 + $0x8] sm:$0xff]
    %v94 = vld [vmem:[%s1 + $0x10] sm:$0xff]
    %v95 = vld [vmem:[%s1 + $0x18] sm:$0xff]
    %v96 = vld [vmem:[%s1 + $0x20] sm:$0xff]
    %v97 = vld [vmem:[%s1 + $0x28] sm:$0xff]
    %v98 = vld [vmem:[%s1 + $0x30] sm:$0xff]
    %v99 = vld [vmem:[%s1 + $0x38] sm:$0xff]
    %v100 = vld [vmem:[%s1 + $0x40] sm:$0xff]
    %v101 = vld [vmem:[%s1 + $0x48] sm:$0xff]
    %v102 = vld [vmem:[%s1 + $0x50] sm:$0xff]
    %v103 = vld [vmem:[%s1 + $0x58] sm:$0xff]
    %v104 = vld [vmem:[%s1 + $0x60] sm:$0xff]
    %v105 = vld [vmem:[%s1 + $0x68] sm:$0xff]
    %v106 = vld [vmem:[%s1 + $0x70] sm:$0xff]
    %v107 = vld [vmem:[%s1 + $0x78] sm:$0xff]
    %v108 = vld [vmem:[%s1 + $0x80] sm:$0xff]
    %v109 = vld [vmem:[%s1 + $0x88] sm:$0xff]
    %v110 = vld [vmem:[%s1 + $0x90] sm:$0xff]
    %v111 = vld [vmem:[%s1 + $0x98] sm:$0xff]
    %v112 = vld [vmem:[%s1 + $0xa0] sm:$0xff]
    %v113 = vld [vmem:[%s1 + $0xa8] sm:$0xff]
    %v114 = vld [vmem:[%s1 + $0xb0] sm:$0xff]
    %v115 = vld [vmem:[%s1 + $0xb8] sm:$0xff]
    %v116 = vld [vmem:[%s1 + $0xc0] sm:$0xff]
    %v117 = vld [vmem:[%s1 + $0xc8] sm:$0xff]
    %v118 = vld [vmem:[%s1 + $0xd0] sm:$0xff]
    %v119 = vld [vmem:[%s1 + $0xd8] sm:$0xff]
    %v120 = vld [vmem:[%s1 + $0xe0] sm:$0xff]
    %v121 = vld [vmem:[%s1 + $0xe8] sm:$0xff]
    %v122 = vld [vmem:[%s1 + $0xf0] sm:$0xff]
    %v123 = vld [vmem:[%s1 + $0xf8] sm:$0xff]
    %v124 = vld [vmem:[#allocation2] sm:$0x1]
    %v126 = vperm.slane %v124, 0
    %128 = vmatpush.msra.mxu0 %v107
    %129 = vmatpush.msra.mxu0 %v106
    %130 = vmatpush.msra.mxu0 %v105
    %131 = vmatpush.msra.mxu0 %v104
    %132 = vmatpush.msra.mxu0 %v103
    %133 = vmatpush.msra.mxu0 %v102
    %134 = vmatpush.msra.mxu0 %v101
    %135 = vmatpush.msra.mxu0 %v100
    %136 = vmatpush.msra.mxu0 %v99
    %137 = vmatpush.msra.mxu0 %v98
    %138 = vmatpush.msra.mxu0 %v97
    %139 = vmatpush.msra.mxu0 %v96
    %140 = vmatpush.msra.mxu0 %v95
    %141 = vmatpush.msra.mxu0 %v94
    %142 = vmatpush.msra.mxu0 %v93
    %143 = vmatpush.msra.mxu0 %v92
    %144 = vmatmul.f32.gmra.mxu0 %v84
    %v145 = vpop.f32.mrf.mxu0
    %v146 = vadd.f32 %v126, %v145
    %147 = vmatmul.f32.gmra.mxu0 %v86
    %v148 = vpop.f32.mrf.mxu0
    %v149 = vadd.f32 %v126, %v148
    %150 = vmatmul.f32.gmra.mxu0 %v88
    %v151 = vpop.f32.mrf.mxu0
    %v152 = vadd.f32 %v126, %v151
    %153 = vmatmul.f32.gmra.mxu0 %v90
    %v154 = vpop.f32.mrf.mxu0
    %v155 = vadd.f32 %v126, %v154
    %156 = vdwg.mxu0
    %157 = vmatpush.msra.mxu0 %v123
    %158 = vmatpush.msra.mxu0 %v122
    %159 = vmatpush.msra.mxu0 %v121
    %160 = vmatpush.msra.mxu0 %v120
    %161 = vmatpush.msra.mxu0 %v119
    %162 = vmatpush.msra.mxu0 %v118
    %163 = vmatpush.msra.mxu0 %v117
    %164 = vmatpush.msra.mxu0 %v116
    %165 = vmatpush.msra.mxu0 %v115
    %166 = vmatpush.msra.mxu0 %v114
    %167 = vmatpush.msra.mxu0 %v113
    %168 = vmatpush.msra.mxu0 %v112
    %169 = vmatpush.msra.mxu0 %v111
    %170 = vmatpush.msra.mxu0 %v110
    %171 = vmatpush.msra.mxu0 %v109
    %172 = vmatpush.msra.mxu0 %v108
    %173 = vmatmul.f32.gmra.mxu0 %v85
    %v174 = vpop.f32.mrf.mxu0
    %v175 = vadd.f32 %v146, %v174
    %176 = vmatmul.f32.gmra.mxu0 %v87
    %v177 = vpop.f32.mrf.mxu0
    %v178 = vadd.f32 %v149, %v177
    %179 = vmatmul.f32.gmra.mxu0 %v89
    %v180 = vpop.f32.mrf.mxu0
    %v181 = vadd.f32 %v152, %v180
    %182 = vmatmul.f32.gmra.mxu0 %v91
    %v183 = vpop.f32.mrf.mxu0
    %v184 = vadd.f32 %v155, %v183
    %185 = vdwg.mxu0
    %v186 = vadd.f32 %v175, 3.0
    %v187 = vadd.f32 %v178, 3.0
    %v188 = vadd.f32 %v181, 3.0
    %v189 = vadd.f32 %v184, 3.0
    %v190 = vmax.f32 %v186, 0.0
    %v191 = vmax.f32 %v187, 0.0
    %v192 = vmax.f32 %v188, 0.0
    %v193 = vmax.f32 %v189, 0.0
    %v194 = vmin.f32 %v190, 6.0
    %v195 = vmin.f32 %v191, 6.0
    %v196 = vmin.f32 %v192, 6.0
    %v197 = vmin.f32 %v193, 6.0
    %v198 = vmul.f32 %v175, %v194
    %v199 = vmul.f32 %v178, %v195
    %v200 = vmul.f32 %v181, %v196
    %v201 = vmul.f32 %v184, %v197
    %v202 = vmul.f32 %v198, 0.16666667
    %v203 = vmul.f32 %v199, 0.16666667
    %v204 = vmul.f32 %v200, 0.16666667
    %v205 = vmul.f32 %v201, 0.16666667
    %v206 = vld [vmem:[#allocation5] sm:$0xff]
    %v207 = vld [vmem:[#allocation5 + $0x8] sm:$0xff]
    %v208 = vld [vmem:[#allocation5 + $0x10] sm:$0xff]
    %v209 = vld [vmem:[#allocation5 + $0x18] sm:$0xff]
    %vm210 = vcmask 261120
    %v212 = vsel %vm210, %v206, 0
    %v215 = vsel %vm210, %v207, 0
    %v218 = vsel %vm210, %v208, 0
    %v221 = vsel %vm210, %v209, 0
    %223 = vmatpush.msra.mxu0 0.0
    %224 = vmatpush.msra.mxu0 0.0
    %225 = vmatpush.msra.mxu0 0.0
    %226 = vmatpush.msra.mxu0 0.0
    %227 = vmatpush.msra.mxu0 0.0
    %228 = vmatpush.msra.mxu0 0.0
    %229 = vmatpush.msra.mxu0 0.0
    %230 = vmatpush.msra.mxu0 0.0
    %231 = vmatpush.msra.mxu0 0.0
    %232 = vmatpush.msra.mxu0 0.0
    %233 = vmatpush.msra.mxu0 0.0
    %234 = vmatpush.msra.mxu0 0.0
    %235 = vmatpush.msra.mxu0 %v205
    %236 = vmatpush.msra.mxu0 %v204
    %237 = vmatpush.msra.mxu0 %v203
    %238 = vmatpush.msra.mxu0 %v202
    %239 = vmatmul.f32.gmra.mxu0 %v212
    %v240 = vpop.f32.mrf.mxu0
    %v241 = vadd.f32 0.0, %v240
    %242 = vmatmul.f32.gmra.mxu0 %v215
    %v243 = vpop.f32.mrf.mxu0
    %v244 = vadd.f32 0.0, %v243
    %245 = vmatmul.f32.gmra.mxu0 %v218
    %v246 = vpop.f32.mrf.mxu0
    %v247 = vadd.f32 0.0, %v246
    %248 = vmatmul.f32.gmra.mxu0 %v221
    %v249 = vpop.f32.mrf.mxu0
    %v250 = vadd.f32 0.0, %v249
    %251 = vdwg.mxu0
    %v252 = vld [vmem:[#allocation7] sm:$0xff]
    %v253 = vld [vmem:[#allocation7 + $0x8] sm:$0xff]
    %v254 = vld [vmem:[#allocation7 + $0x10] sm:$0xff]
    %v255 = vld [vmem:[#allocation7 + $0x18] sm:$0xff]
    %v257 = vsel %vm210, %v252, 0
    %v260 = vsel %vm210, %v253, 0
    %v263 = vsel %vm210, %v254, 0
    %v266 = vsel %vm210, %v255, 0
    %268 = vmatpush.msra.mxu0 0.0
    %269 = vmatpush.msra.mxu0 0.0
    %270 = vmatpush.msra.mxu0 0.0
    %271 = vmatpush.msra.mxu0 0.0
    %272 = vmatpush.msra.mxu0 0.0
    %273 = vmatpush.msra.mxu0 0.0
    %274 = vmatpush.msra.mxu0 0.0
    %275 = vmatpush.msra.mxu0 0.0
    %276 = vmatpush.msra.mxu0 0.0
    %277 = vmatpush.msra.mxu0 0.0
    %278 = vmatpush.msra.mxu0 0.0
    %279 = vmatpush.msra.mxu0 0.0
    %280 = vmatpush.msra.mxu0 %v205
    %281 = vmatpush.msra.mxu0 %v204
    %282 = vmatpush.msra.mxu0 %v203
    %283 = vmatpush.msra.mxu0 %v202
    %284 = vmatmul.f32.gmra.mxu0 %v257
    %v285 = vpop.f32.mrf.mxu0
    %v286 = vadd.f32 0.0, %v285
    %287 = vmatmul.f32.gmra.mxu0 %v260
    %v288 = vpop.f32.mrf.mxu0
    %v289 = vadd.f32 0.0, %v288
    %290 = vmatmul.f32.gmra.mxu0 %v263
    %v291 = vpop.f32.mrf.mxu0
    %v292 = vadd.f32 0.0, %v291
    %293 = vmatmul.f32.gmra.mxu0 %v266
    %v294 = vpop.f32.mrf.mxu0
    %v295 = vadd.f32 0.0, %v294
    %296 = vdwg.mxu0
    %v297 = vld [vmem:[%s5] sm:$0xff]
    %v298 = vld [vmem:[%s5 + $0x8] sm:$0xff]
    %v299 = vld [vmem:[%s5 + $0x10] sm:$0xff]
    %v300 = vld [vmem:[%s5 + $0x18] sm:$0xff]
    %v301 = vld [vmem:[%s5 + $0x20] sm:$0xff]
    %v302 = vld [vmem:[%s5 + $0x28] sm:$0xff]
    %v303 = vld [vmem:[%s5 + $0x30] sm:$0xff]
    %v304 = vld [vmem:[%s5 + $0x38] sm:$0xff]
    %v305 = vld [vmem:[%s6] sm:$0xff]
    %v306 = vld [vmem:[%s6 + $0x8] sm:$0xff]
    %v307 = vld [vmem:[%s6 + $0x10] sm:$0xff]
    %v308 = vld [vmem:[%s6 + $0x18] sm:$0xff]
    %v309 = vld [vmem:[%s6 + $0x20] sm:$0xff]
    %v310 = vld [vmem:[%s6 + $0x28] sm:$0xff]
    %v311 = vld [vmem:[%s6 + $0x30] sm:$0xff]
    %v312 = vld [vmem:[%s6 + $0x38] sm:$0xff]
    %vm313 = vcmask 523264
    %v315 = vsel %vm313, %v202, 0
    %v318 = vsel %vm313, %v203, 0
    %v321 = vsel %vm313, %v204, 0
    %v324 = vsel %vm313, %v205, 0
    %326 = vmatpush.msra.mxu0 0.0
    %327 = vmatpush.msra.mxu0 0.0
    %328 = vmatpush.msra.mxu0 0.0
    %329 = vmatpush.msra.mxu0 0.0
    %330 = vmatpush.msra.mxu0 0.0
    %331 = vmatpush.msra.mxu0 0.0
    %332 = vmatpush.msra.mxu0 0.0
    %333 = vmatpush.msra.mxu0 0.0
    %334 = vmatpush.msra.mxu0 %v312
    %335 = vmatpush.msra.mxu0 %v311
    %336 = vmatpush.msra.mxu0 %v310
    %337 = vmatpush.msra.mxu0 %v309
    %338 = vmatpush.msra.mxu0 %v308
    %339 = vmatpush.msra.mxu0 %v307
    %340 = vmatpush.msra.mxu0 %v306
    %341 = vmatpush.msra.mxu0 %v305
    %342 = vmatmul.f32.gmra.mxu0 %v315
    %v343 = vpop.f32.mrf.mxu0
    %v344 = vadd.f32 0.0, %v343
    %345 = vmatmul.f32.gmra.mxu0 %v318
    %v346 = vpop.f32.mrf.mxu0
    %v347 = vadd.f32 0.0, %v346
    %348 = vmatmul.f32.gmra.mxu0 %v321
    %v349 = vpop.f32.mrf.mxu0
    %v350 = vadd.f32 0.0, %v349
    %351 = vmatmul.f32.gmra.mxu0 %v324
    %v352 = vpop.f32.mrf.mxu0
    %v353 = vadd.f32 0.0, %v352
    %354 = vdwg.mxu0
    %v356 = vsel %vm313, %v241, 0
    %v359 = vsel %vm313, %v244, 0
    %v362 = vsel %vm313, %v247, 0
    %v365 = vsel %vm313, %v250, 0
    %367 = vmatpush.msra.mxu0 0.0
    %368 = vmatpush.msra.mxu0 0.0
    %369 = vmatpush.msra.mxu0 0.0
    %370 = vmatpush.msra.mxu0 0.0
    %371 = vmatpush.msra.mxu0 0.0
    %372 = vmatpush.msra.mxu0 0.0
    %373 = vmatpush.msra.mxu0 0.0
    %374 = vmatpush.msra.mxu0 0.0
    %375 = vmatpush.msra.mxu0 %v304
    %376 = vmatpush.msra.mxu0 %v303
    %377 = vmatpush.msra.mxu0 %v302
    %378 = vmatpush.msra.mxu0 %v301
    %379 = vmatpush.msra.mxu0 %v300
    %380 = vmatpush.msra.mxu0 %v299
    %381 = vmatpush.msra.mxu0 %v298
    %382 = vmatpush.msra.mxu0 %v297
    %383 = vmatmul.f32.gmra.mxu0 %v356
    %v384 = vpop.f32.mrf.mxu0
    %v385 = vadd.f32 %v344, %v384
    %386 = vmatmul.f32.gmra.mxu0 %v359
    %v387 = vpop.f32.mrf.mxu0
    %v388 = vadd.f32 %v347, %v387
    %389 = vmatmul.f32.gmra.mxu0 %v362
    %v390 = vpop.f32.mrf.mxu0
    %v391 = vadd.f32 %v350, %v390
    %392 = vmatmul.f32.gmra.mxu0 %v365
    %v393 = vpop.f32.mrf.mxu0
    %v394 = vadd.f32 %v353, %v393
    %395 = vdwg.mxu0
    %v396 = vld [vmem:[%s7] sm:$0xff]
    %v397 = vld [vmem:[%s7 + $0x8] sm:$0xff]
    %v398 = vld [vmem:[%s7 + $0x10] sm:$0xff]
    %v399 = vld [vmem:[%s7 + $0x18] sm:$0xff]
    %v400 = vld [vmem:[%s7 + $0x20] sm:$0xff]
    %v401 = vld [vmem:[%s7 + $0x28] sm:$0xff]
    %v402 = vld [vmem:[%s7 + $0x30] sm:$0xff]
    %v403 = vld [vmem:[%s7 + $0x38] sm:$0xff]
    %v405 = vsel %vm313, %v286, 0
    %v408 = vsel %vm313, %v289, 0
    %v411 = vsel %vm313, %v292, 0
    %v414 = vsel %vm313, %v295, 0
    %416 = vmatpush.msra.mxu0 0.0
    %417 = vmatpush.msra.mxu0 0.0
    %418 = vmatpush.msra.mxu0 0.0
    %419 = vmatpush.msra.mxu0 0.0
    %420 = vmatpush.msra.mxu0 0.0
    %421 = vmatpush.msra.mxu0 0.0
    %422 = vmatpush.msra.mxu0 0.0
    %423 = vmatpush.msra.mxu0 0.0
    %424 = vmatpush.msra.mxu0 %v403
    %425 = vmatpush.msra.mxu0 %v402
    %426 = vmatpush.msra.mxu0 %v401
    %427 = vmatpush.msra.mxu0 %v400
    %428 = vmatpush.msra.mxu0 %v399
    %429 = vmatpush.msra.mxu0 %v398
    %430 = vmatpush.msra.mxu0 %v397
    %431 = vmatpush.msra.mxu0 %v396
    %432 = vmatmul.f32.gmra.mxu0 %v405
    %v433 = vpop.f32.mrf.mxu0
    %v434 = vadd.f32 0.0, %v433
    %435 = vmatmul.f32.gmra.mxu0 %v408
    %v436 = vpop.f32.mrf.mxu0
    %v437 = vadd.f32 0.0, %v436
    %438 = vmatmul.f32.gmra.mxu0 %v411
    %v439 = vpop.f32.mrf.mxu0
    %v440 = vadd.f32 0.0, %v439
    %441 = vmatmul.f32.gmra.mxu0 %v414
    %v442 = vpop.f32.mrf.mxu0
    %v443 = vadd.f32 0.0, %v442
    %444 = vdwg.mxu0
    %v445 = vadd.f32 %v385, %v434
    %v446 = vadd.f32 %v388, %v437
    %v447 = vadd.f32 %v391, %v440
    %v448 = vadd.f32 %v394, %v443
    %v449 = vld [vmem:[%s8] sm:$0x1]
    %v451 = vperm.slane %v449, 0
    %v453 = vadd.f32 %v445, %v451
    %v454 = vadd.f32 %v446, %v451
    %v455 = vadd.f32 %v447, %v451
    %v456 = vadd.f32 %v448, %v451
    %v457 = vadd.f32 %v453, 3.0
    %v458 = vadd.f32 %v454, 3.0
    %v459 = vadd.f32 %v455, 3.0
    %v460 = vadd.f32 %v456, 3.0
    %v461 = vmax.f32 %v457, 0.0
    %v462 = vmax.f32 %v458, 0.0
    %v463 = vmax.f32 %v459, 0.0
    %v464 = vmax.f32 %v460, 0.0
    %v465 = vmin.f32 %v461, 6.0
    %v466 = vmin.f32 %v462, 6.0
    %v467 = vmin.f32 %v463, 6.0
    %v468 = vmin.f32 %v464, 6.0
    %v469 = vmul.f32 %v453, %v465
    %v470 = vmul.f32 %v454, %v466
    %v471 = vmul.f32 %v455, %v467
    %v472 = vmul.f32 %v456, %v468
    %v473 = vmul.f32 %v469, 0.16666667
    %v474 = vmul.f32 %v470, 0.16666667
    %v475 = vmul.f32 %v471, 0.16666667
    %v476 = vmul.f32 %v472, 0.16666667
    %v477 = vld [vmem:[%s9] sm:$0xff]
    %v478 = vld [vmem:[%s9 + $0x8] sm:$0xff]
    %v479 = vld [vmem:[%s9 + $0x10] sm:$0xff]
    %v480 = vld [vmem:[%s9 + $0x18] sm:$0xff]
    %v481 = vld [vmem:[%s9 + $0x20] sm:$0xff]
    %v482 = vld [vmem:[%s9 + $0x28] sm:$0xff]
    %v483 = vld [vmem:[%s9 + $0x30] sm:$0xff]
    %v484 = vld [vmem:[%s9 + $0x38] sm:$0xff]
    %v485 = vld [vmem:[%s9 + $0x40] sm:$0xff]
    %v486 = vld [vmem:[%s9 + $0x48] sm:$0xff]
    %v487 = vld [vmem:[%s9 + $0x50] sm:$0xff]
    %v488 = vld [vmem:[%s9 + $0x58] sm:$0xff]
    %v489 = vld [vmem:[%s9 + $0x60] sm:$0xff]
    %v490 = vld [vmem:[%s9 + $0x68] sm:$0xff]
    %v491 = vld [vmem:[%s9 + $0x70] sm:$0xff]
    %v492 = vld [vmem:[%s9 + $0x78] sm:$0xff]
    %v493 = vld [vmem:[%s10] sm:$0x3]
    %v495 = vperm.slane %v493, 0
    %v496 = vperm.slane %v493, 1
    %v500 = vsel %vm313, %v473, 0
    %v503 = vsel %vm313, %v474, 0
    %v506 = vsel %vm313, %v475, 0
    %v509 = vsel %vm313, %v476, 0
    %511 = vmatpush.msra.mxu0 0.0
    %512 = vmatpush.msra.mxu0 0.0
    %513 = vmatpush.msra.mxu0 0.0
    %514 = vmatpush.msra.mxu0 0.0
    %515 = vmatpush.msra.mxu0 0.0
    %516 = vmatpush.msra.mxu0 0.0
    %517 = vmatpush.msra.mxu0 0.0
    %518 = vmatpush.msra.mxu0 0.0
    %519 = vmatpush.msra.mxu0 %v491
    %520 = vmatpush.msra.mxu0 %v489
    %521 = vmatpush.msra.mxu0 %v487
    %522 = vmatpush.msra.mxu0 %v485
    %523 = vmatpush.msra.mxu0 %v483
    %524 = vmatpush.msra.mxu0 %v481
    %525 = vmatpush.msra.mxu0 %v479
    %526 = vmatpush.msra.mxu0 %v477
    %527 = vmatmul.f32.gmra.mxu0 %v500
    %v528 = vpop.f32.mrf.mxu0
    %v529 = vadd.f32 %v495, %v528
    %530 = vmatmul.f32.gmra.mxu0 %v503
    %v531 = vpop.f32.mrf.mxu0
    %v532 = vadd.f32 %v495, %v531
    %533 = vmatmul.f32.gmra.mxu0 %v506
    %v534 = vpop.f32.mrf.mxu0
    %v535 = vadd.f32 %v495, %v534
    %536 = vmatmul.f32.gmra.mxu0 %v509
    %v537 = vpop.f32.mrf.mxu0
    %v538 = vadd.f32 %v495, %v537
    %539 = vdwg.mxu0
    %540 = vmatpush.msra.mxu0 0.0
    %541 = vmatpush.msra.mxu0 0.0
    %542 = vmatpush.msra.mxu0 0.0
    %543 = vmatpush.msra.mxu0 0.0
    %544 = vmatpush.msra.mxu0 0.0
    %545 = vmatpush.msra.mxu0 0.0
    %546 = vmatpush.msra.mxu0 0.0
    %547 = vmatpush.msra.mxu0 0.0
    %548 = vmatpush.msra.mxu0 %v492
    %549 = vmatpush.msra.mxu0 %v490
    %550 = vmatpush.msra.mxu0 %v488
    %551 = vmatpush.msra.mxu0 %v486
    %552 = vmatpush.msra.mxu0 %v484
    %553 = vmatpush.msra.mxu0 %v482
    %554 = vmatpush.msra.mxu0 %v480
    %555 = vmatpush.msra.mxu0 %v478
    %556 = vmatmul.f32.gmra.mxu0 %v500
    %v557 = vpop.f32.mrf.mxu0
    %v558 = vadd.f32 %v496, %v557
    %559 = vmatmul.f32.gmra.mxu0 %v503
    %v560 = vpop.f32.mrf.mxu0
    %v561 = vadd.f32 %v496, %v560
    %562 = vmatmul.f32.gmra.mxu0 %v506
    %v563 = vpop.f32.mrf.mxu0
    %v564 = vadd.f32 %v496, %v563
    %565 = vmatmul.f32.gmra.mxu0 %v509
    %v566 = vpop.f32.mrf.mxu0
    %v567 = vadd.f32 %v496, %v566
    %568 = vdwg.mxu0
    %v569 = vadd.f32 %v529, %v84
    %v570 = vadd.f32 %v558, %v85
    %v571 = vadd.f32 %v532, %v86
    %v572 = vadd.f32 %v561, %v87
    %v573 = vadd.f32 %v535, %v88
    %v574 = vadd.f32 %v564, %v89
    %v575 = vadd.f32 %v538, %v90
    %v576 = vadd.f32 %v567, %v91
    %v577 = vadd.f32 %v569, 3.0
    %v578 = vadd.f32 %v570, 3.0
    %v579 = vadd.f32 %v571, 3.0
    %v580 = vadd.f32 %v572, 3.0
    %v581 = vadd.f32 %v573, 3.0
    %v582 = vadd.f32 %v574, 3.0
    %v583 = vadd.f32 %v575, 3.0
    %v584 = vadd.f32 %v576, 3.0
    %v585 = vmax.f32 %v577, 0.0
    %v586 = vmax.f32 %v578, 0.0
    %v587 = vmax.f32 %v579, 0.0
    %v588 = vmax.f32 %v580, 0.0
    %v589 = vmax.f32 %v581, 0.0
    %v590 = vmax.f32 %v582, 0.0
    %v591 = vmax.f32 %v583, 0.0
    %v592 = vmax.f32 %v584, 0.0
    %v593 = vmin.f32 %v585, 6.0
    %v594 = vmin.f32 %v586, 6.0
    %v595 = vmin.f32 %v587, 6.0
    %v596 = vmin.f32 %v588, 6.0
    %v597 = vmin.f32 %v589, 6.0
    %v598 = vmin.f32 %v590, 6.0
    %v599 = vmin.f32 %v591, 6.0
    %v600 = vmin.f32 %v592, 6.0
    %v601 = vmul.f32 %v569, %v593
    %v602 = vmul.f32 %v570, %v594
    %v603 = vmul.f32 %v571, %v595
    %v604 = vmul.f32 %v572, %v596
    %v605 = vmul.f32 %v573, %v597
    %v606 = vmul.f32 %v574, %v598
    %v607 = vmul.f32 %v575, %v599
    %v608 = vmul.f32 %v576, %v600
    %v609 = vmul.f32 %v601, 0.16666667
    %v610 = vmul.f32 %v602, 0.16666667
    %v611 = vmul.f32 %v603, 0.16666667
    %v612 = vmul.f32 %v604, 0.16666667
    %v613 = vmul.f32 %v605, 0.16666667
    %v614 = vmul.f32 %v606, 0.16666667
    %v615 = vmul.f32 %v607, 0.16666667
    %v616 = vmul.f32 %v608, 0.16666667
    %617 = vst [vmem:[#allocation8] sm:$0xff] %v609
    %618 = vst [vmem:[#allocation8 + $0x8] sm:$0xff] %v610
    %619 = vst [vmem:[#allocation8 + $0x10] sm:$0xff] %v611
    %620 = vst [vmem:[#allocation8 + $0x18] sm:$0xff] %v612
    %621 = vst [vmem:[#allocation8 + $0x20] sm:$0xff] %v613
    %622 = vst [vmem:[#allocation8 + $0x28] sm:$0xff] %v614
    %623 = vst [vmem:[#allocation8 + $0x30] sm:$0xff] %v615
    %624 = vst [vmem:[#allocation8 + $0x38] sm:$0xff] %v616
    // Predicated region
    $region58: #{tpu_custom_call.1} parent=1 // pred_check
      _
    $region59: #{tpu_custom_call.1} parent=1 // pred_check_branch
      %626 = sbr.rel (0) target = $region61
    $region60: #{tpu_custom_call.1} parent=1 // pred_region
      %628 = vsyncadd [#allocation4], 0
      %s629 = sshll.u32 [#allocation8], 4
      %s630 = int_to_ptr.vmem [resolvable:$true] %s629
      %s631 = sshll.u32 %s11, 4
      %s632 = int_to_ptr.hbm [resolvable:$true] %s631
      %637 = dma.vmem_to_hbm [thread:$0]  %s630, 1024, %s632, [#allocation4], 256, 256, 16
    $region61: #{tpu_custom_call.1} parent=1 // pred_fallthru
      _
    // Predicated region
    $region62: #{tpu_custom_call.1} parent=1 // pred_check
      _
    $region63: #{tpu_custom_call.1} parent=1 // pred_check_branch
      %639 = sbr.rel (0) target = $region65
    $region64: #{tpu_custom_call.1} parent=1 // pred_region
      %641 = dma.done [#allocation4], 1024
    $region65: #{tpu_custom_call.1} parent=1 // pred_fallthru
      _
    %642 = vsyncpa [#allocation3], 1
    %643 = vsyncpa [#allocation6], 1
    %644 = vsyncpa [#allocation4], 1

</llo_original>
